<compile_context>
chip_gen: v5e
topology: v5e:2x2
jax: 0.10.0
libtpu: 0.0.40
codegen_flags: <defaults>
</compile_context>

<pallas_src>
from functools import partial

import jax
import jax.numpy as jnp
from jax.experimental import pallas as pl
from jax.experimental.pallas import tpu as pltpu


def _round_up(x, m):
    return ((x + m - 1) // m) * m


def _cdiv(a, b):
    return -(-a // b)


def _vmem_budget_bytes():
    """~75% of physical per-core VMEM (headroom for Mosaic internal scratch)."""
    cap = 64 << 20  # conservative fallback (v7x per-TensorCore VMEM)
    try:
        info = pltpu.get_tpu_info()
        cap = int(getattr(info, "vmem_capacity_bytes", cap) or cap)
    except Exception:
        pass
    return (cap * 3) // 4


def _plan_tiles(M, H, x_bytes, out_bytes, budget):
    """Pick (row tile TM, output-column tile TN). TN == H keeps W resident."""
    # Row tile: target ~2 MiB of x per grid step, bounded to [8, 2048] rows.
    tm = max(8, min(2048, _round_up((2 << 20) // max(1, x_bytes * H), 8)))
    if M <= tm:
        # One tile covers all rows; split in two for megacore when M is big.
        tm = M if M < 1024 else _round_up(_cdiv(M, 2), 8)
    else:
        # Balance row tiles across the grid (keeps the ragged tail small).
        tm = _round_up(_cdiv(M, _cdiv(M, tm)), 8)

    def est(tm_, tn_, n_tiled):
        xk = 2 * tm_ * H * x_bytes                       # x (all cols, MXU operand)
        xr = 2 * tm_ * tn_ * x_bytes if n_tiled else 0   # x residual column tile
        w = 2 * H * tn_ * 2                              # bf16 W (double-buffered)
        bias = 2 * tn_ * 4
        out = 2 * tm_ * tn_ * out_bytes
        tmp = tm_ * H * 2 + tm_ * tn_ * 4                # bf16 cast + f32 dot result
        return xk + xr + w + bias + out + tmp + (2 << 20)

    if est(tm, H, False) <= budget:
        return tm, H                                     # W fully resident in VMEM
    tn_opts = [t for t in (4096, 2048, 1024, 512, 256, 128) if t < H]
    for tn in tn_opts:
        if est(tm, tn, True) <= budget:
            return tm, tn
    tn = tn_opts[-1] if tn_opts else H
    while tm > 8 and est(tm, tn, True) > budget:
        tm = max(8, _round_up(tm // 2, 8))
    return tm, tn


def _skip_linear_kernel(x_ref, w_ref, b_ref, o_ref):
    # Resident-W path: x_ref (TM, H), w_ref (H, H) bf16, b_ref (1, H) f32.
    x = x_ref[...]
    y = jnp.dot(x.astype(jnp.bfloat16), w_ref[...],
                preferred_element_type=jnp.float32)
    o_ref[...] = (x.astype(jnp.float32) + y + b_ref[...]).astype(o_ref.dtype)


def _skip_linear_ntiled_kernel(xk_ref, xr_ref, w_ref, b_ref, o_ref):
    # Column-tiled path: xk_ref (TM, H) feeds the MXU, xr_ref (TM, TN) is the
    # matching residual column slab, w_ref (H, TN) bf16, b_ref (1, TN) f32.
    y = jnp.dot(xk_ref[...].astype(jnp.bfloat16), w_ref[...],
                preferred_element_type=jnp.float32)
    o_ref[...] = (xr_ref[...].astype(jnp.float32) + y + b_ref[...]).astype(o_ref.dtype)


@partial(jax.jit, static_argnames=("block_rows", "block_cols"))
def skip_connection_linear(x, w_t, b, *, block_rows=None, block_cols=None):
    """x: [B, S, H]; w_t: [H, H] (transpose of torch Linear weight); b: [H]."""
    B, S, H = x.shape
    M = B * S

    budget = _vmem_budget_bytes()
    tm, tn = _plan_tiles(M, H, x.dtype.itemsize, x.dtype.itemsize, budget)
    if block_rows is not None:
        tm = int(block_rows)
    if block_cols is not None:
        tn = int(block_cols)
    n_tiled = tn < H

    x2 = x.reshape(M, H)                    # free reshape; no padding, no copy
    w_bf = w_t.astype(jnp.bfloat16)         # one-time small weight cast
    b2 = b.reshape(1, H).astype(jnp.float32)

    grid = (pl.cdiv(M, tm), pl.cdiv(H, tn))
    out_spec = pl.BlockSpec((tm, tn), lambda i, j: (i, j))
    if n_tiled:
        kernel = _skip_linear_ntiled_kernel
        in_specs = [
            pl.BlockSpec((tm, H), lambda i, j: (i, 0)),   # x, full K for the MXU
            pl.BlockSpec((tm, tn), lambda i, j: (i, j)),  # x, residual columns
            pl.BlockSpec((H, tn), lambda i, j: (0, j)),   # W column block (streamed)
            pl.BlockSpec((1, tn), lambda i, j: (0, j)),   # bias column block
        ]
        operands = (x2, x2, w_bf, b2)
    else:
        kernel = _skip_linear_kernel
        in_specs = [
            pl.BlockSpec((tm, H), lambda i, j: (i, 0)),   # streamed row tiles
            pl.BlockSpec((H, H), lambda i, j: (0, 0)),    # W resident in VMEM
            pl.BlockSpec((1, H), lambda i, j: (0, 0)),    # bias resident
        ]
        operands = (x2, w_bf, b2)

    out2 = pl.pallas_call(
        kernel,
        out_shape=jax.ShapeDtypeStruct((M, H), x.dtype),
        grid_spec=pl.GridSpec(grid=grid, in_specs=in_specs, out_specs=out_spec),
        compiler_params=pltpu.CompilerParams(
            dimension_semantics=("parallel", "arbitrary"),
            vmem_limit_bytes=int(budget),
        ),
    )(*operands)

    return out2.reshape(B, S, H)


def _reference(x, w_t, b):
    # Same numerics as the kernel: bf16 matmul inputs, f32 accumulation,
    # f32 residual/bias add.
    y = jnp.einsum("bsh,hk->bsk", x.astype(jnp.bfloat16),
                   w_t.astype(jnp.bfloat16),
                   preferred_element_type=jnp.float32)
    return x + (y + b)


def _check(out, ref, name):
    assert out.shape == ref.shape, f"{name}: shape {out.shape} != {ref.shape}"
    assert jnp.allclose(out, ref, atol=2e-3, rtol=2e-3), f"mismatch vs reference ({name})"


if __name__ == "__main__":
    key = jax.random.PRNGKey(0)

    def make(k, batch, seq, hidden):
        kx, kw, kb = jax.random.split(k, 3)
        x = jax.random.normal(kx, (batch, seq, hidden), dtype=jnp.float32)
        bound = 1.0 / (hidden ** 0.5)
        w_t = jax.random.uniform(kw, (hidden, hidden), jnp.float32, -bound, bound)
        b = jax.random.uniform(kb, (hidden,), jnp.float32, -bound, bound)
        return x, w_t, b

    k1, k2, k3 = jax.random.split(key, 3)

    # 1) Small canonical shape: resident-W path, single full-extent tile.
    x, w_t, b = make(k1, 2, 8, 32)
    out = jax.block_until_ready(skip_connection_linear(x, w_t, b))
    _check(out, _reference(x, w_t, b), "small")

    # 2) Multi-row-tile resident path (megacore split at M >= 1024), lane-dense H=128.
    x, w_t, b = make(k2, 4, 400, 128)
    out = jax.block_until_ready(skip_connection_linear(x, w_t, b))
    _check(out, _reference(x, w_t, b), "multi-tile")

    # 3) Column-tiled path with ragged row AND column tails (masked partial
    #    tiles), forced via block overrides so it is exercised at small shapes.
    x, w_t, b = make(k3, 2, 70, 200)
    out = jax.block_until_ready(
        skip_connection_linear(x, w_t, b, block_rows=64, block_cols=128))
    _check(out, _reference(x, w_t, b), "n-tiled/ragged")

    print("KERNEL_OK")
</pallas_src>

<mosaic_0001>
module attributes {stable_mosaic.version = 11 : i64} {
  func.func @_skip_linear_kernel(%arg0: i32, %arg1: i32, %arg2: memref<16x32xf32, #tpu.memory_space<vmem>>, %arg3: memref<32x32xbf16, #tpu.memory_space<vmem>>, %arg4: memref<1x32xf32, #tpu.memory_space<vmem>>, %arg5: memref<16x32xf32, #tpu.memory_space<vmem>>) attributes {dimension_semantics = [#tpu.dimension_semantics<parallel>, #tpu.dimension_semantics<arbitrary>], iteration_bounds = array<i64: 1, 1>, scalar_prefetch = 0 : i64, scratch_operands = 0 : i64, tpu.core_type = #tpu.core_type<tc>, window_params = [{transform_indices = @transform_0, window_bounds = array<i64: 16, 32>}, {pipeline_mode = #tpu.pipeline_mode<synchronous>, transform_indices = @transform_1, window_bounds = array<i64: 32, 32>}, {pipeline_mode = #tpu.pipeline_mode<synchronous>, transform_indices = @transform_2, window_bounds = array<i64: 1, 32>}, {transform_indices = @transform_3, window_bounds = array<i64: 16, 32>}]} {
    %c0 = arith.constant 0 : index
    %c0_0 = arith.constant 0 : index
    %0 = vector.load %arg2[%c0, %c0_0] : memref<16x32xf32, #tpu.memory_space<vmem>>, vector<16x32xf32>
    %1 = arith.truncf %0 : vector<16x32xf32> to vector<16x32xbf16>
    %c0_1 = arith.constant 0 : index
    %c0_2 = arith.constant 0 : index
    %2 = vector.load %arg3[%c0_1, %c0_2] : memref<32x32xbf16, #tpu.memory_space<vmem>>, vector<32x32xbf16>
    %cst = arith.constant dense<0.000000e+00> : vector<16x32xf32>
    %3 = tpu.matmul %1, %2, %cst {dimension_numbers = #tpu.dot_dimension_numbers<[1], [0], [0], [1], [0, 0, 1, 1], [], []>} : vector<16x32xbf16>, vector<32x32xbf16>, vector<16x32xf32> -> vector<16x32xf32>
    %4 = arith.addf %0, %3 : vector<16x32xf32>
    %c0_3 = arith.constant 0 : index
    %c0_4 = arith.constant 0 : index
    %5 = vector.load %arg4[%c0_3, %c0_4] : memref<1x32xf32, #tpu.memory_space<vmem>>, vector<1x32xf32>
    %6 = vector.broadcast %5 : vector<1x32xf32> to vector<16x32xf32>
    %7 = arith.addf %4, %6 : vector<16x32xf32>
    %c0_5 = arith.constant 0 : index
    %c0_6 = arith.constant 0 : index
    %8 = vector.load %arg5[%c0_5, %c0_6] : memref<16x32xf32, #tpu.memory_space<vmem>>, vector<16x32xf32>
    tpu.vector_store %arg5[%c0_5, %c0_6], %7 {strides = array<i32>} : memref<16x32xf32, #tpu.memory_space<vmem>>, vector<16x32xf32>,
    return
  }
  func.func @transform_0(%arg0: i32, %arg1: i32) -> (i32, i32) {
    %c0_i32 = arith.constant 0 : i32
    %c0_i32_0 = arith.constant 0 : i32
    return %arg0, %c0_i32 : i32, i32
  }
  func.func @transform_1(%arg0: i32, %arg1: i32) -> (i32, i32) {
    %c0_i32 = arith.constant 0 : i32
    %c0_i32_0 = arith.constant 0 : i32
    %c0_i32_1 = arith.constant 0 : i32
    return %c0_i32, %c0_i32_0 : i32, i32
  }
  func.func @transform_2(%arg0: i32, %arg1: i32) -> (i32, i32) {
    %c0_i32 = arith.constant 0 : i32
    %c0_i32_0 = arith.constant 0 : i32
    %c0_i32_1 = arith.constant 0 : i32
    return %c0_i32, %c0_i32_0 : i32, i32
  }
  func.func @transform_3(%arg0: i32, %arg1: i32) -> (i32, i32) {
    %c0_i32 = arith.constant 0 : i32
    return %arg0, %arg1 : i32, i32
  }
}

</mosaic_0001>

<llo_original>
// kernel: skip_connection_linear.1
$region0: #{skip_connection_linear.1}
  #allocation0 [shape = 'u32[]', space=smem, size = 0x4, offset = 0x4, fixed_abs, tag = 'smem constant byte address 0x4 - core index']
  #allocation1 [shape = 'u32[72,128]{1,0:T(1,128)}', space=vmem, size = 0x9000, scoped, tag = 'internal scratch']
  %s0 = inlined_call_operand.vmem [shape: f32[16,32], index: 0, kind: input, shape index: {}]
  %s1 = inlined_call_operand.vmem [shape: bf16[32,32], index: 1, kind: input, shape index: {}]
  %s2 = inlined_call_operand.vmem [shape: f32[1,32], index: 2, kind: input, shape index: {}]
  %s3 = inlined_call_operand.hbm [shape: f32[16,32], index: 3, kind: output, shape index: {}]
  %s4 = sld [smem:[#allocation0]]
  $region22: #{skip_connection_linear.1} parent=0
    _
  %s6 = ssub.s32 1, %s4
  %s7 = scalar_select 0, %s6, %s4
  $region1: #{skip_connection_linear.1} parent=0
    #allocation2 [shape = 'u8[8192]{0}', space=vmem, size = 0x2000, scoped, tag = 'output window, operand 0, single buffered']
    #allocation3 [shape = 's32[1]{0}', space=sflag, size = 0x4, scoped, tag = 'scoped memory for skip_connection_linear.1']
    %8 = vsyncpa [#allocation3], 0
    // Predicated region
    $region2: #{skip_connection_linear.1} parent=1 // pred_check
      _
    $region3: #{skip_connection_linear.1} parent=1 // pred_check_branch
      %10 = sbr.rel (0) target = $region5
    $region4: #{skip_connection_linear.1} parent=1 // pred_region
      _
    $region5: #{skip_connection_linear.1} parent=1 // pred_fallthru
      _
    // Predicated region
    $region6: #{skip_connection_linear.1} parent=1 // pred_check
      _
    $region7: #{skip_connection_linear.1} parent=1 // pred_check_branch
      %12 = sbr.rel (0) target = $region9
    $region8: #{skip_connection_linear.1} parent=1 // pred_region
      _
    $region9: #{skip_connection_linear.1} parent=1 // pred_fallthru
      _
    // Predicated region
    $region10: #{skip_connection_linear.1} parent=1 // pred_check
      _
    $region11: #{skip_connection_linear.1} parent=1 // pred_check_branch
      %14 = sbr.rel (0) target = $region13
    $region12: #{skip_connection_linear.1} parent=1 // pred_region
      _
    $region13: #{skip_connection_linear.1} parent=1 // pred_fallthru
      _
    %v16 = vld [vmem:[%s0] sm:$0xff]
    %v17 = vld [vmem:[%s0 + $0x8] sm:$0xff]
    %v18 = vpack.c.bf16 %v17, %v16
    %v19 = vld [vmem:[%s1] sm:$0xf]
    %v20 = vld [vmem:[%s1 + $0x4] sm:$0xf]
    %v21 = vld [vmem:[%s1 + $0x8] sm:$0xf]
    %v22 = vld [vmem:[%s1 + $0xc] sm:$0xf]
    %v27 = vunpack.c.l.b16 %v19
    %v28 = vunpack.c.l.b16 %v20
    %v29 = vunpack.c.l.b16 %v21
    %v30 = vunpack.c.l.b16 %v22
    %v31 = vpack.c.b16 %v28, %v27
    %v32 = vpack.c.b16 %v30, %v29
    %vm35 = vcmask 261120
    %v37 = vsel %vm35, %v18, 0
    %39 = vmatpush.bf16.msra.mxu0 0
    %40 = vmatpush.bf16.msra.mxu0 0
    %41 = vmatpush.bf16.msra.mxu0 0
    %42 = vmatpush.bf16.msra.mxu0 0
    %43 = vmatpush.bf16.msra.mxu0 0
    %44 = vmatpush.bf16.msra.mxu0 0
    %45 = vmatpush.bf16.msra.mxu0 %v32
    %46 = vmatpush.bf16.msra.mxu0 %v31
    %47 = vmatmul.bf16.gmra.mxu0 %v37
    %v48 = vpop.f32.mrf.mxu0
    %v49 = vadd.f32 0.0, %v48
    %v50 = vpop.f32.mrf.mxu0
    %v51 = vadd.f32 0.0, %v50
    %52 = vdwg.mxu0
    %v53 = vadd.f32 %v16, %v49
    %v54 = vadd.f32 %v17, %v51
    %v55 = vld [vmem:[%s2] sm:$0x1]
    %v57 = vperm.slane %v55, 0
    %v59 = vadd.f32 %v53, %v57
    %v60 = vadd.f32 %v54, %v57
    %61 = vst.msk [vmem:[#allocation2] sm:$0xff] %vm35, %v59
    %62 = vst.msk [vmem:[#allocation2 + $0x8] sm:$0xff] %vm35, %v60
    // Predicated region
    $region14: #{skip_connection_linear.1} parent=1 // pred_check
      _
    $region15: #{skip_connection_linear.1} parent=1 // pred_check_branch
      %64 = sbr.rel (0) target = $region17
    $region16: #{skip_connection_linear.1} parent=1 // pred_region
      %66 = vsyncadd [#allocation3], 0
      %s67 = sshll.u32 [#allocation2], 4
      %s68 = int_to_ptr.vmem [resolvable:$true] %s67
      %s69 = sshll.u32 %s3, 4
      %s70 = int_to_ptr.hbm [resolvable:$true] %s69
      %75 = dma.vmem_to_hbm [thread:$0]  %s68, 256, %s70, [#allocation3], 128, 128, 8
    $region17: #{skip_connection_linear.1} parent=1 // pred_fallthru
      _
    // Predicated region
    $region18: #{skip_connection_linear.1} parent=1 // pred_check
      _
    $region19: #{skip_connection_linear.1} parent=1 // pred_check_branch
      %77 = sbr.rel (0) target = $region21
    $region20: #{skip_connection_linear.1} parent=1 // pred_region
      %79 = dma.done [#allocation3], 256
    $region21: #{skip_connection_linear.1} parent=1 // pred_fallthru
      _
    %80 = vsyncpa [#allocation3], 1

</llo_original>
